<compile_context>
chip_gen: v7x
topology: tpu7x:2x2x1
jax: 0.10.0
libtpu: 0.0.40
codegen_flags: <defaults>
</compile_context>

<pallas_src>
import functools

import jax
import jax.numpy as jnp
from jax import lax
from jax.experimental import pallas as pl
from jax.experimental.pallas import tpu as pltpu


_SUBLANE_GRANULE = {4: 8, 2: 16, 1: 32}   # second-minor-dim granularity per itemsize


def _round_up(a, b):
    return -(-a // b) * b


def _pick_block_rows(n_rows, in_lanes, out_lanes, itemsize, granule,
                     hbm_bytes_per_row, target_hbm_bytes, vmem_budget_bytes):
    """Rows per grid step.

    Big enough that each step moves >= target_hbm_bytes of HBM traffic
    (amortizes the ~0.35us fixed per-step overhead), small enough that the
    double-buffered, *lane-padded* in/out blocks fit the VMEM budget with
    headroom left for the resident weight blocks / compiler-internal scratch.
    """
    vmem_per_row = 2 * (_round_up(in_lanes, 128) + _round_up(out_lanes, 128)) * itemsize
    budget = max(vmem_budget_bytes - (4 << 20), vmem_per_row * granule)
    cap = budget // vmem_per_row
    want = -(-target_hbm_bytes // max(hbm_bytes_per_row, 1))
    rows = max(granule, min(want, cap))
    if rows >= n_rows:
        return n_rows                        # single full-extent block
    return min(n_rows, max(granule, (rows // granule) * granule))


def _clamp_block_rows(block_rows, n_rows, granule):
    block_rows = max(1, block_rows)
    if block_rows >= n_rows:
        return n_rows
    return min(n_rows, max(granule, (block_rows // granule) * granule))


def _packed_mlp_kernel(x_ref, w1_ref, b1_ref, w2_ref, b2_ref, o_ref):
    """Lane-dense path: both layers on the MXU with block-diagonal weights.

    x_ref : (TB, gy*nin)   -- gy batch rows packed per block row
    w1_ref: (gy*nin, gy*hid)    b1_ref: (1, gy*hid)
    w2_ref: (gy*hid, 128)       b2_ref: (1, 128)
    o_ref : (TB, 128)      -- gy output rows packed per block row (full lanes)
    """
    z = jnp.dot(x_ref[...], w1_ref[...], preferred_element_type=jnp.float32)
    h = jnp.tanh(z + b1_ref[...].astype(jnp.float32))
    y = jnp.dot(h.astype(w2_ref.dtype), w2_ref[...],
                preferred_element_type=jnp.float32)
    o_ref[...] = (y + b2_ref[...].astype(jnp.float32)).astype(o_ref.dtype)


def _rowmajor_mlp_kernel(x_ref, w1_ref, b1_ref, w2_ref, b2_ref, o_ref, *, hid):
    """General fallback: natural [batch, feature] layout; the K=hid(=2) second
    layer is a VPU FMA epilogue (a padded MXU push/pop would be >98% waste)."""
    h = jnp.dot(x_ref[...], w1_ref[...], preferred_element_type=jnp.float32)
    h = jnp.tanh(h + b1_ref[...].astype(jnp.float32))
    w2 = w2_ref[...].astype(jnp.float32)
    y = b2_ref[...].astype(jnp.float32)
    for k in range(hid):                     # hid is tiny & static -> unrolled FMAs
        y = y + h[:, k:k + 1] * w2[k:k + 1, :]
    o_ref[...] = y.astype(o_ref.dtype)


def resnet_forward(x, w1, b1, w2, b2, *, batch_tile=None,
                   vmem_budget_bytes=48 * 1024 * 1024,
                   target_hbm_bytes_per_step=4 * 1024 * 1024):
    """tanh(x @ w1 + b1) @ w2 + b2  (== PyTorch resNet.forward).

    x: (B, nin); w1: (nin, hid); b1: (1, hid); w2: (hid, nout); b2: (1, nout).
    Weights are stored as the transpose of PyTorch's nn.Linear.weight.
    `batch_tile` (in batch rows) overrides the auto-picked grid block.
    `vmem_budget_bytes`: 48 MiB is v7x-safe; raise to 64-96 MiB on v5e/v6e.
    """
    B, nin = x.shape
    nin_w, hid = w1.shape
    hid_w, nout = w2.shape
    assert nin == nin_w and hid == hid_w
    b1 = jnp.reshape(b1, (1, hid))
    b2 = jnp.reshape(b2, (1, nout))

    itemsize = jnp.dtype(x.dtype).itemsize
    granule = _SUBLANE_GRANULE.get(itemsize, 8)
    compiler_params = pltpu.CompilerParams(
        dimension_semantics=("parallel",),        # megacore shards the batch axis
        vmem_limit_bytes=int(vmem_budget_bytes),  # explicit: scoped defaults differ per gen
    )
    w_bytes = (w1.size + b1.size + w2.size + b2.size) * jnp.dtype(w1.dtype).itemsize
    cost = pl.CostEstimate(
        flops=2 * B * (nin * hid + hid * nout),
        transcendentals=B * hid,
        bytes_accessed=B * (nin + nout) * itemsize + w_bytes,
    )

    gy = 128 // nout if (nout <= 128 and 128 % nout == 0) else 0
    if gy and B > 0 and B % gy == 0:
        # ------------------- packed lane-dense path -------------------------
        n_rows = B // gy
        in_lanes = gy * nin
        hbm_per_row = gy * (nin + nout) * itemsize
        if batch_tile is None:
            block_rows = _pick_block_rows(n_rows, in_lanes, 128, itemsize, granule,
                                          hbm_per_row, target_hbm_bytes_per_step,
                                          vmem_budget_bytes)
        else:
            block_rows = _clamp_block_rows(batch_tile // gy, n_rows, granule)

        # Free row-major reshape (no data movement): gy batch rows per packed row.
        x_p = jnp.reshape(x, (n_rows, in_lanes))
        # Lift weights to block-diagonal so both matmuls stay lane-dense.
        w1_big = jnp.kron(jnp.eye(gy, dtype=w1.dtype), w1)      # (gy*nin, gy*hid)
        w2_big = jnp.kron(jnp.eye(gy, dtype=w2.dtype), w2)      # (gy*hid, 128)
        b1_big = jnp.tile(b1, (1, gy))                          # (1, gy*hid)
        b2_big = jnp.tile(b2, (1, gy))                          # (1, 128)

        out_flat = pl.pallas_call(
            _packed_mlp_kernel,
            out_shape=jax.ShapeDtypeStruct((n_rows, 128), x.dtype),
            grid_spec=pl.GridSpec(
                grid=(pl.cdiv(n_rows, block_rows),),            # ragged tail masked by Pallas
                in_specs=[
                    # TODO(synk): sweep pipeline_mode=pl.Buffered(3) on x only if a
                    # profile still shows exposed DMA latency at this block size.
                    pl.BlockSpec((block_rows, in_lanes), lambda i: (i, 0)),  # x (pipelined)
                    pl.BlockSpec((gy * nin, gy * hid), lambda i: (0, 0)),    # W1 blk-diag (resident)
                    pl.BlockSpec((1, gy * hid), lambda i: (0, 0)),           # b1
                    pl.BlockSpec((gy * hid, 128), lambda i: (0, 0)),         # W2 blk-diag
                    pl.BlockSpec((1, 128), lambda i: (0, 0)),                # b2
                ],
                out_specs=pl.BlockSpec((block_rows, 128), lambda i: (i, 0)), # lane-dense out
            ),
            compiler_params=compiler_params,
            cost_estimate=cost,
        )(x_p, w1_big, b1_big, w2_big, b2_big)
        return jnp.reshape(out_flat, (B, nout))                 # free reshape back

    # --------------------- general row-major fallback -----------------------
    hbm_per_row = (nin + nout) * itemsize
    if batch_tile is None:
        block_rows = _pick_block_rows(B, nin, nout, itemsize, granule, hbm_per_row,
                                      target_hbm_bytes_per_step, vmem_budget_bytes)
    else:
        block_rows = _clamp_block_rows(batch_tile, B, granule)

    kernel = functools.partial(_rowmajor_mlp_kernel, hid=hid)
    return pl.pallas_call(
        kernel,
        out_shape=jax.ShapeDtypeStruct((B, nout), x.dtype),
        grid_spec=pl.GridSpec(
            grid=(pl.cdiv(B, block_rows),),                     # no wrapper pad / slice
            in_specs=[
                pl.BlockSpec((block_rows, nin), lambda i: (i, 0)),
                pl.BlockSpec((nin, hid), lambda i: (0, 0)),
                pl.BlockSpec((1, hid), lambda i: (0, 0)),
                pl.BlockSpec((hid, nout), lambda i: (0, 0)),
                pl.BlockSpec((1, nout), lambda i: (0, 0)),
            ],
            out_specs=pl.BlockSpec((block_rows, nout), lambda i: (i, 0)),
        ),
        compiler_params=compiler_params,
        cost_estimate=cost,
    )(x, w1, b1, w2, b2)


def init_params(key, nin, nout, dtype=jnp.float32):
    """Deterministic init matching nn.Linear's U(-1/sqrt(fan_in), 1/sqrt(fan_in))."""
    k1, k2, k3, k4 = jax.random.split(key, 4)
    hid = 2
    bound1 = 1.0 / (nin ** 0.5)
    bound2 = 1.0 / (hid ** 0.5)
    # Stored as (in, out) = transpose of PyTorch's (out, in) weight.
    w1 = jax.random.uniform(k1, (nin, hid), dtype, minval=-bound1, maxval=bound1)
    b1 = jax.random.uniform(k2, (1, hid), dtype, minval=-bound1, maxval=bound1)
    w2 = jax.random.uniform(k3, (hid, nout), dtype, minval=-bound2, maxval=bound2)
    b2 = jax.random.uniform(k4, (1, nout), dtype, minval=-bound2, maxval=bound2)
    return w1, b1, w2, b2


def reference_forward(x, w1, b1, w2, b2):
    hi = lax.Precision.HIGHEST
    h = jnp.tanh(jnp.dot(x, w1, precision=hi) + b1)
    return jnp.dot(h, w2, precision=hi) + b2


if __name__ == "__main__":
    key = jax.random.PRNGKey(0)
    kx1, kx2, kx3, kp = jax.random.split(key, 4)

    nin, nout = 32, 16
    w1, b1, w2, b2 = init_params(kp, nin, nout)

    # Kernel matmuls use default (single-pass bf16) MXU precision per the perf
    # review; tolerance is sized for that operand rounding vs. the f32 reference.
    TOL = dict(atol=2e-2, rtol=2e-2)

    # 1) Small aligned batch -> packed lane-dense path, single block.
    x1 = jax.random.normal(kx1, (64, nin), dtype=jnp.float32)
    o1 = jax.block_until_ready(resnet_forward(x1, w1, b1, w2, b2))
    assert o1.shape == (64, nout)
    assert jnp.allclose(o1, reference_forward(x1, w1, b1, w2, b2), **TOL)

    # 2) Packed path with a multi-step pipelined grid and a ragged final block:
    #    272 rows -> 34 packed rows, 8-row blocks -> grid=(5,), no pad / slice.
    x2 = jax.random.normal(kx2, (272, nin), dtype=jnp.float32)
    o2 = jax.block_until_ready(resnet_forward(x2, w1, b1, w2, b2, batch_tile=64))
    assert o2.shape == (272, nout)
    assert jnp.allclose(o2, reference_forward(x2, w1, b1, w2, b2), **TOL)

    # 3) B not a multiple of 128//nout -> general row-major fallback path.
    x3 = jax.random.normal(kx3, (270, nin), dtype=jnp.float32)
    o3 = jax.block_until_ready(resnet_forward(x3, w1, b1, w2, b2))
    assert o3.shape == (270, nout)
    assert jnp.allclose(o3, reference_forward(x3, w1, b1, w2, b2), **TOL)

    print("KERNEL_OK")
</pallas_src>

<mosaic_0001>
module attributes {stable_mosaic.version = 11 : i64} {
  func.func @_packed_mlp_kernel(%arg0: i32, %arg1: memref<8x256xf32, #tpu.memory_space<vmem>>, %arg2: memref<256x16xf32, #tpu.memory_space<vmem>>, %arg3: memref<1x16xf32, #tpu.memory_space<vmem>>, %arg4: memref<16x128xf32, #tpu.memory_space<vmem>>, %arg5: memref<1x128xf32, #tpu.memory_space<vmem>>, %arg6: memref<8x128xf32, #tpu.memory_space<vmem>>) attributes {dimension_semantics = [#tpu.dimension_semantics<parallel>], iteration_bounds = array<i64: 1>, scalar_prefetch = 0 : i64, scratch_operands = 0 : i64, tpu.core_type = #tpu.core_type<tc>, window_params = [{transform_indices = @transform_0, window_bounds = array<i64: 8, 256>}, {pipeline_mode = #tpu.pipeline_mode<synchronous>, transform_indices = @transform_1, window_bounds = array<i64: 256, 16>}, {pipeline_mode = #tpu.pipeline_mode<synchronous>, transform_indices = @transform_2, window_bounds = array<i64: 1, 16>}, {pipeline_mode = #tpu.pipeline_mode<synchronous>, transform_indices = @transform_3, window_bounds = array<i64: 16, 128>}, {pipeline_mode = #tpu.pipeline_mode<synchronous>, transform_indices = @transform_4, window_bounds = array<i64: 1, 128>}, {transform_indices = @transform_5, window_bounds = array<i64: 8, 128>}]} {
    %c0 = arith.constant 0 : index
    %c0_0 = arith.constant 0 : index
    %0 = vector.load %arg1[%c0, %c0_0] : memref<8x256xf32, #tpu.memory_space<vmem>>, vector<8x256xf32>
    %c0_1 = arith.constant 0 : index
    %c0_2 = arith.constant 0 : index
    %1 = vector.load %arg2[%c0_1, %c0_2] : memref<256x16xf32, #tpu.memory_space<vmem>>, vector<256x16xf32>
    %cst = arith.constant dense<0.000000e+00> : vector<8x16xf32>
    %2 = tpu.matmul %0, %1, %cst {dimension_numbers = #tpu.dot_dimension_numbers<[1], [0], [0], [1], [0, 0, 1, 1], [], []>} : vector<8x256xf32>, vector<256x16xf32>, vector<8x16xf32> -> vector<8x16xf32>
    %c0_3 = arith.constant 0 : index
    %c0_4 = arith.constant 0 : index
    %3 = vector.load %arg3[%c0_3, %c0_4] : memref<1x16xf32, #tpu.memory_space<vmem>>, vector<1x16xf32>
    %4 = vector.broadcast %3 : vector<1x16xf32> to vector<8x16xf32>
    %5 = arith.addf %2, %4 : vector<8x16xf32>
    %6 = math.tanh %5 : vector<8x16xf32>
    %c0_5 = arith.constant 0 : index
    %c0_6 = arith.constant 0 : index
    %7 = vector.load %arg4[%c0_5, %c0_6] : memref<16x128xf32, #tpu.memory_space<vmem>>, vector<16x128xf32>
    %cst_7 = arith.constant dense<0.000000e+00> : vector<8x128xf32>
    %8 = tpu.matmul %6, %7, %cst_7 {dimension_numbers = #tpu.dot_dimension_numbers<[1], [0], [0], [1], [0, 0, 1, 1], [], []>} : vector<8x16xf32>, vector<16x128xf32>, vector<8x128xf32> -> vector<8x128xf32>
    %c0_8 = arith.constant 0 : index
    %c0_9 = arith.constant 0 : index
    %9 = vector.load %arg5[%c0_8, %c0_9] : memref<1x128xf32, #tpu.memory_space<vmem>>, vector<1x128xf32>
    %10 = vector.broadcast %9 : vector<1x128xf32> to vector<8x128xf32>
    %11 = arith.addf %8, %10 : vector<8x128xf32>
    %c0_10 = arith.constant 0 : index
    %c0_11 = arith.constant 0 : index
    %12 = vector.load %arg6[%c0_10, %c0_11] : memref<8x128xf32, #tpu.memory_space<vmem>>, vector<8x128xf32>
    tpu.vector_store %arg6[%c0_10, %c0_11], %11 {strides = array<i32>} : memref<8x128xf32, #tpu.memory_space<vmem>>, vector<8x128xf32>,
    return
  }
  func.func @transform_0(%arg0: i32) -> (i32, i32) {
    %c0_i32 = arith.constant 0 : i32
    %c0_i32_0 = arith.constant 0 : i32
    return %arg0, %c0_i32 : i32, i32
  }
  func.func @transform_1(%arg0: i32) -> (i32, i32) {
    %c0_i32 = arith.constant 0 : i32
    %c0_i32_0 = arith.constant 0 : i32
    %c0_i32_1 = arith.constant 0 : i32
    return %c0_i32, %c0_i32_0 : i32, i32
  }
  func.func @transform_2(%arg0: i32) -> (i32, i32) {
    %c0_i32 = arith.constant 0 : i32
    %c0_i32_0 = arith.constant 0 : i32
    %c0_i32_1 = arith.constant 0 : i32
    return %c0_i32, %c0_i32_0 : i32, i32
  }
  func.func @transform_3(%arg0: i32) -> (i32, i32) {
    %c0_i32 = arith.constant 0 : i32
    %c0_i32_0 = arith.constant 0 : i32
    %c0_i32_1 = arith.constant 0 : i32
    return %c0_i32, %c0_i32_0 : i32, i32
  }
  func.func @transform_4(%arg0: i32) -> (i32, i32) {
    %c0_i32 = arith.constant 0 : i32
    %c0_i32_0 = arith.constant 0 : i32
    %c0_i32_1 = arith.constant 0 : i32
    return %c0_i32, %c0_i32_0 : i32, i32
  }
  func.func @transform_5(%arg0: i32) -> (i32, i32) {
    %c0_i32 = arith.constant 0 : i32
    %c0_i32_0 = arith.constant 0 : i32
    return %arg0, %c0_i32 : i32, i32
  }
}

</mosaic_0001>

<llo_original>
// kernel: tpu_custom_call.1
$region0: #{tpu_custom_call.1}
  #allocation0 [shape = 'u32[]', space=smem, size = 0x4, offset = 0x4, fixed_abs, tag = 'smem constant byte address 0x4 - core index']
  #allocation1 [shape = 'u32[144,128]{1,0:T(1,128)}', space=vmem, size = 0x12000, scoped, tag = 'internal scratch']
  %s0 = inlined_call_operand.vmem [shape: f32[8,256], index: 0, kind: input, shape index: {}]
  %s1 = inlined_call_operand.vmem [shape: f32[256,16], index: 1, kind: input, shape index: {}]
  %s2 = inlined_call_operand.vmem [shape: f32[1,16], index: 2, kind: input, shape index: {}]
  %s3 = inlined_call_operand.vmem [shape: f32[16,128], index: 3, kind: input, shape index: {}]
  %s4 = inlined_call_operand.vmem [shape: f32[1,128], index: 4, kind: input, shape index: {}]
  %s5 = inlined_call_operand.hbm [shape: f32[8,128], index: 5, kind: output, shape index: {}]
  %s6 = sld [smem:[#allocation0]]
  $region30: #{tpu_custom_call.1} parent=0
    _
  %s8 = ssub.s32 1, %s6
  %s9 = scalar_select 0, %s8, %s6
  $region1: #{tpu_custom_call.1} parent=0
    #allocation2 [shape = 'u8[4096]{0}', space=vmem, size = 0x1000, scoped, tag = 'output window, operand 0, single buffered']
    #allocation3 [shape = 's32[1]{0}', space=sflag, size = 0x4, scoped, tag = 'scoped memory for tpu_custom_call.1']
    %10 = vsyncpa [#allocation3], 0
    // Predicated region
    $region2: #{tpu_custom_call.1} parent=1 // pred_check
      _
    $region3: #{tpu_custom_call.1} parent=1 // pred_check_branch
      %12 = sbr.rel (0) target = $region5
    $region4: #{tpu_custom_call.1} parent=1 // pred_region
      _
    $region5: #{tpu_custom_call.1} parent=1 // pred_fallthru
      _
    // Predicated region
    $region6: #{tpu_custom_call.1} parent=1 // pred_check
      _
    $region7: #{tpu_custom_call.1} parent=1 // pred_check_branch
      %14 = sbr.rel (0) target = $region9
    $region8: #{tpu_custom_call.1} parent=1 // pred_region
      _
    $region9: #{tpu_custom_call.1} parent=1 // pred_fallthru
      _
    // Predicated region
    $region10: #{tpu_custom_call.1} parent=1 // pred_check
      _
    $region11: #{tpu_custom_call.1} parent=1 // pred_check_branch
      %16 = sbr.rel (0) target = $region13
    $region12: #{tpu_custom_call.1} parent=1 // pred_region
      _
    $region13: #{tpu_custom_call.1} parent=1 // pred_fallthru
      _
    // Predicated region
    $region14: #{tpu_custom_call.1} parent=1 // pred_check
      _
    $region15: #{tpu_custom_call.1} parent=1 // pred_check_branch
      %18 = sbr.rel (0) target = $region17
    $region16: #{tpu_custom_call.1} parent=1 // pred_region
      _
    $region17: #{tpu_custom_call.1} parent=1 // pred_fallthru
      _
    // Predicated region
    $region18: #{tpu_custom_call.1} parent=1 // pred_check
      _
    $region19: #{tpu_custom_call.1} parent=1 // pred_check_branch
      %20 = sbr.rel (0) target = $region21
    $region20: #{tpu_custom_call.1} parent=1 // pred_region
      _
    $region21: #{tpu_custom_call.1} parent=1 // pred_fallthru
      _
    %v21 = vld [vmem:[%s0] sm:$0xff]
    %v22 = vld [vmem:[%s0 + $0x8] sm:$0xff]
    %v23 = vld [vmem:[%s1] sm:$0xff]
    %v24 = vld [vmem:[%s1 + $0x8] sm:$0xff]
    %v25 = vld [vmem:[%s1 + $0x10] sm:$0xff]
    %v26 = vld [vmem:[%s1 + $0x18] sm:$0xff]
    %v27 = vld [vmem:[%s1 + $0x20] sm:$0xff]
    %v28 = vld [vmem:[%s1 + $0x28] sm:$0xff]
    %v29 = vld [vmem:[%s1 + $0x30] sm:$0xff]
    %v30 = vld [vmem:[%s1 + $0x38] sm:$0xff]
    %v31 = vld [vmem:[%s1 + $0x40] sm:$0xff]
    %v32 = vld [vmem:[%s1 + $0x48] sm:$0xff]
    %v33 = vld [vmem:[%s1 + $0x50] sm:$0xff]
    %v34 = vld [vmem:[%s1 + $0x58] sm:$0xff]
    %v35 = vld [vmem:[%s1 + $0x60] sm:$0xff]
    %v36 = vld [vmem:[%s1 + $0x68] sm:$0xff]
    %v37 = vld [vmem:[%s1 + $0x70] sm:$0xff]
    %v38 = vld [vmem:[%s1 + $0x78] sm:$0xff]
    %v39 = vld [vmem:[%s1 + $0x80] sm:$0xff]
    %v40 = vld [vmem:[%s1 + $0x88] sm:$0xff]
    %v41 = vld [vmem:[%s1 + $0x90] sm:$0xff]
    %v42 = vld [vmem:[%s1 + $0x98] sm:$0xff]
    %v43 = vld [vmem:[%s1 + $0xa0] sm:$0xff]
    %v44 = vld [vmem:[%s1 + $0xa8] sm:$0xff]
    %v45 = vld [vmem:[%s1 + $0xb0] sm:$0xff]
    %v46 = vld [vmem:[%s1 + $0xb8] sm:$0xff]
    %v47 = vld [vmem:[%s1 + $0xc0] sm:$0xff]
    %v48 = vld [vmem:[%s1 + $0xc8] sm:$0xff]
    %v49 = vld [vmem:[%s1 + $0xd0] sm:$0xff]
    %v50 = vld [vmem:[%s1 + $0xd8] sm:$0xff]
    %v51 = vld [vmem:[%s1 + $0xe0] sm:$0xff]
    %v52 = vld [vmem:[%s1 + $0xe8] sm:$0xff]
    %v53 = vld [vmem:[%s1 + $0xf0] sm:$0xff]
    %v54 = vld [vmem:[%s1 + $0xf8] sm:$0xff]
    %v55 = vld [vmem:[%s2] sm:$0x1]
    %v57 = vlaneseq
    %v58 = vshrl.u32 %v57, 7
    %v59 = vsub.s32 0, %v58
    %v60 = vrot.slane %v55, %v59
    %62 = vmatprep.subr.mxu0 0.0
    %63 = vmatpush1.msra.mxu0 %v23
    %64 = vmatprep.subr.mxu0 0.0
    %65 = vmatpush1.msra.mxu0 %v24
    %66 = vmatprep.subr.mxu0 0.0
    %67 = vmatpush1.msra.mxu0 %v25
    %68 = vmatprep.subr.mxu0 0.0
    %69 = vmatpush1.msra.mxu0 %v26
    %70 = vmatprep.subr.mxu0 0.0
    %71 = vmatpush1.msra.mxu0 %v27
    %72 = vmatprep.subr.mxu0 0.0
    %73 = vmatpush1.msra.mxu0 %v28
    %74 = vmatprep.subr.mxu0 0.0
    %75 = vmatpush1.msra.mxu0 %v29
    %76 = vmatprep.subr.mxu0 0.0
    %77 = vmatpush1.msra.mxu0 %v30
    %78 = vmatprep.subr.mxu0 0.0
    %79 = vmatpush1.msra.mxu0 %v31
    %80 = vmatprep.subr.mxu0 0.0
    %81 = vmatpush1.msra.mxu0 %v32
    %82 = vmatprep.subr.mxu0 0.0
    %83 = vmatpush1.msra.mxu0 %v33
    %84 = vmatprep.subr.mxu0 0.0
    %85 = vmatpush1.msra.mxu0 %v34
    %86 = vmatprep.subr.mxu0 0.0
    %87 = vmatpush1.msra.mxu0 %v35
    %88 = vmatprep.subr.mxu0 0.0
    %89 = vmatpush1.msra.mxu0 %v36
    %90 = vmatprep.subr.mxu0 0.0
    %91 = vmatpush1.msra.mxu0 %v37
    %92 = vmatprep.subr.mxu0 0.0
    %93 = vmatpush1.msra.mxu0 %v38
    %94 = vmatprep.subr.mxu0 0.0
    %95 = vmatpush1.msra.mxu0 %v39
    %96 = vmatprep.subr.mxu0 0.0
    %97 = vmatpush1.msra.mxu0 %v40
    %98 = vmatprep.subr.mxu0 0.0
    %99 = vmatpush1.msra.mxu0 %v41
    %100 = vmatprep.subr.mxu0 0.0
    %101 = vmatpush1.msra.mxu0 %v42
    %102 = vmatprep.subr.mxu0 0.0
    %103 = vmatpush1.msra.mxu0 %v43
    %104 = vmatprep.subr.mxu0 0.0
    %105 = vmatpush1.msra.mxu0 %v44
    %106 = vmatprep.subr.mxu0 0.0
    %107 = vmatpush1.msra.mxu0 %v45
    %108 = vmatprep.subr.mxu0 0.0
    %109 = vmatpush1.msra.mxu0 %v46
    %110 = vmatprep.subr.mxu0 0.0
    %111 = vmatpush1.msra.mxu0 %v47
    %112 = vmatprep.subr.mxu0 0.0
    %113 = vmatpush1.msra.mxu0 %v48
    %114 = vmatprep.subr.mxu0 0.0
    %115 = vmatpush1.msra.mxu0 %v49
    %116 = vmatprep.subr.mxu0 0.0
    %117 = vmatpush1.msra.mxu0 %v50
    %118 = vmatprep.subr.mxu0 0.0
    %119 = vmatpush1.msra.mxu0 %v51
    %120 = vmatprep.subr.mxu0 0.0
    %121 = vmatpush1.msra.mxu0 %v52
    %122 = vmatprep.subr.mxu0 0.0
    %123 = vmatpush1.msra.mxu0 %v53
    %124 = vmatprep.subr.mxu0 0.0
    %125 = vmatpush1.msra.mxu0 %v54
    %126 = vmatprep.mubr.f32.mxu0 %v22
    %127 = vmatmul.mubr.f32.gmra.mrb[0].mxu0 %v21
    %v128 = vpop.f32.mrb[0].mxu0
    %v129 = vadd.f32 %v60, %v128
    %v130 = vpop.f32.mrb[0].mxu0
    %131 = vdwg.mxu0
    %v132 = vtanh.pop %v129
    %v133 = vld [vmem:[%s3] sm:$0xff]
    %v134 = vld [vmem:[%s3 + $0x8] sm:$0xff]
    %v135 = vld [vmem:[%s4] sm:$0x1]
    %v137 = vlaneseq
    %v138 = vshrl.u32 %v137, 7
    %v139 = vsub.s32 0, %v138
    %v140 = vrot.slane %v135, %v139
    %vm142 = vcmask 130048
    %v144 = vsel %vm142, %v132, 0
    %146 = vmatprep.subr.mxu0 0.0
    %147 = vmatpush1.msra.mxu0 %v133
    %148 = vmatprep.subr.mxu0 0.0
    %149 = vmatpush1.msra.mxu0 %v134
    %150 = vmatprep.subr.mxu0 0.0
    %151 = vmatpush1.msra.mxu0 0.0
    %152 = vmatprep.subr.mxu0 0.0
    %153 = vmatpush1.msra.mxu0 0.0
    %154 = vmatprep.subr.mxu0 0.0
    %155 = vmatpush1.msra.mxu0 0.0
    %156 = vmatprep.subr.mxu0 0.0
    %157 = vmatpush1.msra.mxu0 0.0
    %158 = vmatprep.subr.mxu0 0.0
    %159 = vmatpush1.msra.mxu0 0.0
    %160 = vmatprep.subr.mxu0 0.0
    %161 = vmatpush1.msra.mxu0 0.0
    %162 = vmatprep.subr.mxu0 0.0
    %163 = vmatpush1.msra.mxu0 0.0
    %164 = vmatprep.subr.mxu0 0.0
    %165 = vmatpush1.msra.mxu0 0.0
    %166 = vmatprep.subr.mxu0 0.0
    %167 = vmatpush1.msra.mxu0 0.0
    %168 = vmatprep.subr.mxu0 0.0
    %169 = vmatpush1.msra.mxu0 0.0
    %170 = vmatprep.subr.mxu0 0.0
    %171 = vmatpush1.msra.mxu0 0.0
    %172 = vmatprep.subr.mxu0 0.0
    %173 = vmatpush1.msra.mxu0 0.0
    %174 = vmatprep.subr.mxu0 0.0
    %175 = vmatpush1.msra.mxu0 0.0
    %176 = vmatprep.subr.mxu0 0.0
    %177 = vmatpush1.msra.mxu0 0.0
    %178 = vmatprep.subr.mxu0 0.0
    %179 = vmatpush1.msra.mxu0 0.0
    %180 = vmatprep.subr.mxu0 0.0
    %181 = vmatpush1.msra.mxu0 0.0
    %182 = vmatprep.subr.mxu0 0.0
    %183 = vmatpush1.msra.mxu0 0.0
    %184 = vmatprep.subr.mxu0 0.0
    %185 = vmatpush1.msra.mxu0 0.0
    %186 = vmatprep.subr.mxu0 0.0
    %187 = vmatpush1.msra.mxu0 0.0
    %188 = vmatprep.subr.mxu0 0.0
    %189 = vmatpush1.msra.mxu0 0.0
    %190 = vmatprep.subr.mxu0 0.0
    %191 = vmatpush1.msra.mxu0 0.0
    %192 = vmatprep.subr.mxu0 0.0
    %193 = vmatpush1.msra.mxu0 0.0
    %194 = vmatprep.subr.mxu0 0.0
    %195 = vmatpush1.msra.mxu0 0.0
    %196 = vmatprep.subr.mxu0 0.0
    %197 = vmatpush1.msra.mxu0 0.0
    %198 = vmatprep.subr.mxu0 0.0
    %199 = vmatpush1.msra.mxu0 0.0
    %200 = vmatprep.subr.mxu0 0.0
    %201 = vmatpush1.msra.mxu0 0.0
    %202 = vmatprep.subr.mxu0 0.0
    %203 = vmatpush1.msra.mxu0 0.0
    %204 = vmatprep.subr.mxu0 0.0
    %205 = vmatpush1.msra.mxu0 0.0
    %206 = vmatprep.subr.mxu0 0.0
    %207 = vmatpush1.msra.mxu0 0.0
    %208 = vmatprep.subr.mxu0 0.0
    %209 = vmatpush1.msra.mxu0 0.0
    %210 = vmatprep.mubr.f32.mxu0 0.0
    %211 = vmatmul.mubr.f32.gmra.mrb[0].mxu0 %v144
    %v212 = vpop.f32.mrb[0].mxu0
    %v213 = vadd.f32 %v140, %v212
    %v214 = vpop.f32.mrb[0].mxu0
    %215 = vdwg.mxu0
    %216 = vst [vmem:[#allocation2] sm:$0xff] %v213
    // Predicated region
    $region22: #{tpu_custom_call.1} parent=1 // pred_check
      _
    $region23: #{tpu_custom_call.1} parent=1 // pred_check_branch
      %218 = sbr.rel (0) target = $region25
    $region24: #{tpu_custom_call.1} parent=1 // pred_region
      %s220 = ssub.s32 128, 128
      %221 = vsyncadd [#allocation3], %s220
      %s223 = sshll.u32 [#allocation2], 4
      %s224 = int_to_ptr.vmem [resolvable:$true] %s223
      %226 = dma.vmem_to_hbm [thread:$0]  %s224, 128, %s5, [#allocation3]
    $region25: #{tpu_custom_call.1} parent=1 // pred_fallthru
      _
    // Predicated region
    $region26: #{tpu_custom_call.1} parent=1 // pred_check
      _
    $region27: #{tpu_custom_call.1} parent=1 // pred_check_branch
      %228 = sbr.rel (0) target = $region29
    $region28: #{tpu_custom_call.1} parent=1 // pred_region
      %229 = dma.done [#allocation3], 128
    $region29: #{tpu_custom_call.1} parent=1 // pred_fallthru
      _
    %230 = vsyncpa [#allocation3], 1

</llo_original>
